<compile_context>
chip_gen: v5e
topology: v5e:2x2
jax: 0.10.0
libtpu: 0.0.40
codegen_flags: <defaults>
</compile_context>

<pallas_src>
from functools import partial

import jax
import jax.numpy as jnp
from jax.experimental import pallas as pl
from jax.experimental.pallas import tpu as pltpu


def actor_forward_kernel(state_ref,
                         w1_ref, b1_ref,
                         w2_ref, b2_ref,
                         wh_ref, bh_ref,
                         out_ref,
                         *, action_dim):
    x = state_ref[...]

    # fc1 + ReLU
    h1 = jnp.dot(x, w1_ref[...], preferred_element_type=jnp.float32) + b1_ref[...]
    h1 = jnp.maximum(h1, 0.0)

    # fc2 + ReLU
    h2 = jnp.dot(h1, w2_ref[...], preferred_element_type=jnp.float32) + b2_ref[...]
    h2 = jnp.maximum(h2, 0.0)

    # fused [mu | log_std] head: single MXU pass for both heads
    heads = jnp.dot(h2, wh_ref[...], preferred_element_type=jnp.float32) + bh_ref[...]

    # cols [0, A)  -> mu (pass through)
    # cols [A, 2A) -> std = exp(clip(log_std, -20, 2))
    col = jax.lax.broadcasted_iota(jnp.int32, heads.shape, 1)
    std_all = jnp.exp(jnp.clip(heads, -20.0, 2.0))
    out_ref[...] = jnp.where(col >= action_dim, std_all, heads).astype(out_ref.dtype)


def actor_forward(state, params):
    """Pallas-backed Actor.forward. Returns (mu, std)."""
    B, state_dim = state.shape
    two_a = params["whead"].shape[1]
    action_dim = two_a // 2

    # Batch tile: whole batch if small, otherwise 512-row blocks sharded
    # "parallel" across TensorCores. Weights/biases stay whole & VMEM-resident.
    tb = B if B <= 512 else 512
    grid = (pl.cdiv(B, tb),)

    def whole(arr):
        # full-array block, constant index -> resident across grid iterations
        return pl.BlockSpec(arr.shape, lambda i: (0, 0))

    packed = pl.pallas_call(
        partial(actor_forward_kernel, action_dim=action_dim),
        out_shape=jax.ShapeDtypeStruct((B, two_a), jnp.float32),
        grid=grid,
        in_specs=[
            pl.BlockSpec((tb, state_dim), lambda i: (i, 0)),   # state (per-block)
            whole(params["w1"]), whole(params["b1"]),
            whole(params["w2"]), whole(params["b2"]),
            whole(params["whead"]), whole(params["bhead"]),
        ],
        out_specs=pl.BlockSpec((tb, two_a), lambda i: (i, 0)),
        compiler_params=pltpu.CompilerParams(
            dimension_semantics=("parallel",)),
    )(state,
      params["w1"], params["b1"],
      params["w2"], params["b2"],
      params["whead"], params["bhead"])

    mu = packed[:, :action_dim]
    std = packed[:, action_dim:]
    return mu, std


def xavier_uniform(key, fan_in, fan_out):
    # matches torch.nn.init.xavier_uniform_ (gain=1.0)
    limit = jnp.sqrt(6.0 / (fan_in + fan_out))
    return jax.random.uniform(key, (fan_in, fan_out), jnp.float32, -limit, limit)


def init_actor_params(key, state_dim, action_dim, hidden_dim):
    k1, k2, k3, k4 = jax.random.split(key, 4)
    wmu = xavier_uniform(k3, hidden_dim, action_dim)
    wls = xavier_uniform(k4, hidden_dim, action_dim)
    return {
        "w1": xavier_uniform(k1, state_dim, hidden_dim),
        "b1": jnp.full((1, hidden_dim), 0.01, jnp.float32),
        "w2": xavier_uniform(k2, hidden_dim, hidden_dim),
        "b2": jnp.full((1, hidden_dim), 0.01, jnp.float32),
        # fused head: [wmu | wls], [bmu | bls]
        "whead": jnp.concatenate([wmu, wls], axis=1),
        "bhead": jnp.full((1, 2 * action_dim), 0.01, jnp.float32),
    }


def actor_forward_ref(state, params):
    """Pure-JAX reference for validation (mirrors the PyTorch forward)."""
    A = params["whead"].shape[1] // 2
    h1 = jnp.maximum(state @ params["w1"] + params["b1"], 0.0)
    h2 = jnp.maximum(h1 @ params["w2"] + params["b2"], 0.0)
    heads = h2 @ params["whead"] + params["bhead"]
    mu = heads[:, :A]
    log_std = jnp.clip(heads[:, A:], -20.0, 2.0)
    return mu, jnp.exp(log_std)


# TODO(synk): Actor.sample() (rsample + tanh squash + log_prob) could be fused
# into the same kernel with pltpu PRNG; only forward() is implemented here.

if __name__ == "__main__":
    key = jax.random.PRNGKey(0)
    k_params, k_state = jax.random.split(key)

    batch = 8
    state_dim = 16
    action_dim = 4
    hidden_dim = 32
    # max_action is only used in Actor.sample(), not forward(); unused here.

    params = init_actor_params(k_params, state_dim, action_dim, hidden_dim)
    state = jax.random.normal(k_state, (batch, state_dim), jnp.float32)

    mu, std = jax.jit(actor_forward)(state, params)
    jax.block_until_ready((mu, std))

    mu_ref, std_ref = actor_forward_ref(state, params)
    assert mu.shape == (batch, action_dim) and std.shape == (batch, action_dim)
    assert jnp.allclose(mu, mu_ref, atol=1e-5, rtol=1e-5)
    assert jnp.allclose(std, std_ref, atol=1e-5, rtol=1e-5)
    assert bool(jnp.all(std > 0))

    print("KERNEL_OK")
</pallas_src>

<mosaic_0001>
module attributes {stable_mosaic.version = 11 : i64} {
  func.func @actor_forward_kernel(%arg0: i32, %arg1: memref<8x16xf32, #tpu.memory_space<vmem>>, %arg2: memref<16x32xf32, #tpu.memory_space<vmem>>, %arg3: memref<1x32xf32, #tpu.memory_space<vmem>>, %arg4: memref<32x32xf32, #tpu.memory_space<vmem>>, %arg5: memref<1x32xf32, #tpu.memory_space<vmem>>, %arg6: memref<32x8xf32, #tpu.memory_space<vmem>>, %arg7: memref<1x8xf32, #tpu.memory_space<vmem>>, %arg8: memref<8x8xf32, #tpu.memory_space<vmem>>) attributes {dimension_semantics = [#tpu.dimension_semantics<parallel>], iteration_bounds = array<i64: 1>, scalar_prefetch = 0 : i64, scratch_operands = 0 : i64, tpu.core_type = #tpu.core_type<tc>, window_params = [{transform_indices = @transform_0, window_bounds = array<i64: 8, 16>}, {pipeline_mode = #tpu.pipeline_mode<synchronous>, transform_indices = @transform_1, window_bounds = array<i64: 16, 32>}, {pipeline_mode = #tpu.pipeline_mode<synchronous>, transform_indices = @transform_2, window_bounds = array<i64: 1, 32>}, {pipeline_mode = #tpu.pipeline_mode<synchronous>, transform_indices = @transform_3, window_bounds = array<i64: 32, 32>}, {pipeline_mode = #tpu.pipeline_mode<synchronous>, transform_indices = @transform_4, window_bounds = array<i64: 1, 32>}, {pipeline_mode = #tpu.pipeline_mode<synchronous>, transform_indices = @transform_5, window_bounds = array<i64: 32, 8>}, {pipeline_mode = #tpu.pipeline_mode<synchronous>, transform_indices = @transform_6, window_bounds = array<i64: 1, 8>}, {transform_indices = @transform_7, window_bounds = array<i64: 8, 8>}]} {
    %c0 = arith.constant 0 : index
    %c0_0 = arith.constant 0 : index
    %0 = vector.load %arg1[%c0, %c0_0] : memref<8x16xf32, #tpu.memory_space<vmem>>, vector<8x16xf32>
    %c0_1 = arith.constant 0 : index
    %c0_2 = arith.constant 0 : index
    %1 = vector.load %arg2[%c0_1, %c0_2] : memref<16x32xf32, #tpu.memory_space<vmem>>, vector<16x32xf32>
    %cst = arith.constant dense<0.000000e+00> : vector<8x32xf32>
    %2 = tpu.matmul %0, %1, %cst {dimension_numbers = #tpu.dot_dimension_numbers<[1], [0], [0], [1], [0, 0, 1, 1], [], []>} : vector<8x16xf32>, vector<16x32xf32>, vector<8x32xf32> -> vector<8x32xf32>
    %c0_3 = arith.constant 0 : index
    %c0_4 = arith.constant 0 : index
    %3 = vector.load %arg3[%c0_3, %c0_4] : memref<1x32xf32, #tpu.memory_space<vmem>>, vector<1x32xf32>
    %4 = vector.broadcast %3 : vector<1x32xf32> to vector<8x32xf32>
    %5 = arith.addf %2, %4 : vector<8x32xf32>
    %cst_5 = arith.constant 0.000000e+00 : f32
    %6 = vector.broadcast %cst_5 : f32 to vector<8x32xf32>
    %7 = arith.maximumf %5, %6 : vector<8x32xf32>
    %c0_6 = arith.constant 0 : index
    %c0_7 = arith.constant 0 : index
    %8 = vector.load %arg4[%c0_6, %c0_7] : memref<32x32xf32, #tpu.memory_space<vmem>>, vector<32x32xf32>
    %cst_8 = arith.constant dense<0.000000e+00> : vector<8x32xf32>
    %9 = tpu.matmul %7, %8, %cst_8 {dimension_numbers = #tpu.dot_dimension_numbers<[1], [0], [0], [1], [0, 0, 1, 1], [], []>} : vector<8x32xf32>, vector<32x32xf32>, vector<8x32xf32> -> vector<8x32xf32>
    %c0_9 = arith.constant 0 : index
    %c0_10 = arith.constant 0 : index
    %10 = vector.load %arg5[%c0_9, %c0_10] : memref<1x32xf32, #tpu.memory_space<vmem>>, vector<1x32xf32>
    %11 = vector.broadcast %10 : vector<1x32xf32> to vector<8x32xf32>
    %12 = arith.addf %9, %11 : vector<8x32xf32>
    %cst_11 = arith.constant 0.000000e+00 : f32
    %13 = vector.broadcast %cst_11 : f32 to vector<8x32xf32>
    %14 = arith.maximumf %12, %13 : vector<8x32xf32>
    %c0_12 = arith.constant 0 : index
    %c0_13 = arith.constant 0 : index
    %15 = vector.load %arg6[%c0_12, %c0_13] : memref<32x8xf32, #tpu.memory_space<vmem>>, vector<32x8xf32>
    %cst_14 = arith.constant dense<0.000000e+00> : vector<8x8xf32>
    %16 = tpu.matmul %14, %15, %cst_14 {dimension_numbers = #tpu.dot_dimension_numbers<[1], [0], [0], [1], [0, 0, 1, 1], [], []>} : vector<8x32xf32>, vector<32x8xf32>, vector<8x8xf32> -> vector<8x8xf32>
    %c0_15 = arith.constant 0 : index
    %c0_16 = arith.constant 0 : index
    %17 = vector.load %arg7[%c0_15, %c0_16] : memref<1x8xf32, #tpu.memory_space<vmem>>, vector<1x8xf32>
    %18 = vector.broadcast %17 : vector<1x8xf32> to vector<8x8xf32>
    %19 = arith.addf %16, %18 : vector<8x8xf32>
    %20 = tpu.iota {dimensions = array<i32: 1>} : vector<8x8xi32>
    %cst_17 = arith.constant -2.000000e+01 : f32
    %cst_18 = arith.constant 2.000000e+00 : f32
    %21 = vector.broadcast %cst_17 : f32 to vector<8x8xf32>
    %22 = arith.maximumf %21, %19 : vector<8x8xf32>
    %23 = vector.broadcast %cst_18 : f32 to vector<8x8xf32>
    %24 = arith.minimumf %23, %22 : vector<8x8xf32>
    %25 = math.exp %24 : vector<8x8xf32>
    %c4_i32 = arith.constant 4 : i32
    %26 = vector.broadcast %c4_i32 : i32 to vector<8x8xi32>
    %27 = arith.cmpi sge, %20, %26 : vector<8x8xi32>
    %28 = arith.select %27, %25, %19 : vector<8x8xi1>, vector<8x8xf32>
    %c0_19 = arith.constant 0 : index
    %c0_20 = arith.constant 0 : index
    %29 = vector.load %arg8[%c0_19, %c0_20] : memref<8x8xf32, #tpu.memory_space<vmem>>, vector<8x8xf32>
    tpu.vector_store %arg8[%c0_19, %c0_20], %28 {strides = array<i32>} : memref<8x8xf32, #tpu.memory_space<vmem>>, vector<8x8xf32>,
    return
  }
  func.func @transform_0(%arg0: i32) -> (i32, i32) {
    %c0_i32 = arith.constant 0 : i32
    %c0_i32_0 = arith.constant 0 : i32
    return %arg0, %c0_i32 : i32, i32
  }
  func.func @transform_1(%arg0: i32) -> (i32, i32) {
    %c0_i32 = arith.constant 0 : i32
    %c0_i32_0 = arith.constant 0 : i32
    %c0_i32_1 = arith.constant 0 : i32
    return %c0_i32, %c0_i32_0 : i32, i32
  }
  func.func @transform_2(%arg0: i32) -> (i32, i32) {
    %c0_i32 = arith.constant 0 : i32
    %c0_i32_0 = arith.constant 0 : i32
    %c0_i32_1 = arith.constant 0 : i32
    return %c0_i32, %c0_i32_0 : i32, i32
  }
  func.func @transform_3(%arg0: i32) -> (i32, i32) {
    %c0_i32 = arith.constant 0 : i32
    %c0_i32_0 = arith.constant 0 : i32
    %c0_i32_1 = arith.constant 0 : i32
    return %c0_i32, %c0_i32_0 : i32, i32
  }
  func.func @transform_4(%arg0: i32) -> (i32, i32) {
    %c0_i32 = arith.constant 0 : i32
    %c0_i32_0 = arith.constant 0 : i32
    %c0_i32_1 = arith.constant 0 : i32
    return %c0_i32, %c0_i32_0 : i32, i32
  }
  func.func @transform_5(%arg0: i32) -> (i32, i32) {
    %c0_i32 = arith.constant 0 : i32
    %c0_i32_0 = arith.constant 0 : i32
    %c0_i32_1 = arith.constant 0 : i32
    return %c0_i32, %c0_i32_0 : i32, i32
  }
  func.func @transform_6(%arg0: i32) -> (i32, i32) {
    %c0_i32 = arith.constant 0 : i32
    %c0_i32_0 = arith.constant 0 : i32
    %c0_i32_1 = arith.constant 0 : i32
    return %c0_i32, %c0_i32_0 : i32, i32
  }
  func.func @transform_7(%arg0: i32) -> (i32, i32) {
    %c0_i32 = arith.constant 0 : i32
    %c0_i32_0 = arith.constant 0 : i32
    return %arg0, %c0_i32 : i32, i32
  }
}

</mosaic_0001>

<llo_original>
// kernel: actor_forward.1
$region0: #{actor_forward.1}
  #allocation0 [shape = 'u32[]', space=smem, size = 0x4, offset = 0x4, fixed_abs, tag = 'smem constant byte address 0x4 - core index']
  #allocation1 [shape = 'u32[72,128]{1,0:T(1,128)}', space=vmem, size = 0x9000, scoped, tag = 'internal scratch']
  %s0 = inlined_call_operand.vmem [shape: f32[8,16], index: 0, kind: input, shape index: {}]
  %s1 = inlined_call_operand.hbm [shape: f32[16,32], index: 1, kind: input, shape index: {}]
  %s2 = inlined_call_operand.vmem [shape: f32[1,32], index: 2, kind: input, shape index: {}]
  %s3 = inlined_call_operand.vmem [shape: f32[32,32], index: 3, kind: input, shape index: {}]
  %s4 = inlined_call_operand.vmem [shape: f32[1,32], index: 4, kind: input, shape index: {}]
  %s5 = inlined_call_operand.vmem [shape: f32[32,8], index: 5, kind: input, shape index: {}]
  %s6 = inlined_call_operand.vmem [shape: f32[1,8], index: 6, kind: input, shape index: {}]
  %s7 = inlined_call_operand.vmem [shape: f32[8,8], index: 7, kind: output, shape index: {}]
  %s8 = sld [smem:[#allocation0]]
  $region42: #{actor_forward.1} parent=0
    _
  %s10 = ssub.s32 1, %s8
  %s11 = scalar_select 0, %s10, %s8
  $region1: #{actor_forward.1} parent=0
    #allocation2 [shape = 'u8[8192]{0}', space=vmem, size = 0x2000, scoped, tag = 'input window, operand 1, single buffered']
    #allocation3 [shape = 's32[1]{0}', space=sflag, size = 0x4, scoped, tag = 'scoped memory for actor_forward.1']
    %12 = vsyncpa [#allocation3], 0
    // Predicated region
    $region2: #{actor_forward.1} parent=1 // pred_check
      _
    $region3: #{actor_forward.1} parent=1 // pred_check_branch
      %14 = sbr.rel (0) target = $region5
    $region4: #{actor_forward.1} parent=1 // pred_region
      _
    $region5: #{actor_forward.1} parent=1 // pred_fallthru
      _
    // Predicated region
    $region6: #{actor_forward.1} parent=1 // pred_check
      _
    $region7: #{actor_forward.1} parent=1 // pred_check_branch
      %16 = sbr.rel (0) target = $region9
    $region8: #{actor_forward.1} parent=1 // pred_region
      %18 = vsyncadd [#allocation3], 0
      %s19 = sshll.u32 %s1, 4
      %s20 = int_to_ptr.hbm [resolvable:$true] %s19
      %s21 = sshll.u32 [#allocation2], 4
      %s22 = int_to_ptr.vmem [resolvable:$true] %s21
      %27 = dma.hbm_to_vmem [thread:$0]  %s20, 256, %s22, [#allocation3], 128, 128, 8
    $region9: #{actor_forward.1} parent=1 // pred_fallthru
      _
    // Predicated region
    $region10: #{actor_forward.1} parent=1 // pred_check
      _
    $region11: #{actor_forward.1} parent=1 // pred_check_branch
      %29 = sbr.rel (0) target = $region13
    $region12: #{actor_forward.1} parent=1 // pred_region
      _
    $region13: #{actor_forward.1} parent=1 // pred_fallthru
      _
    // Predicated region
    $region14: #{actor_forward.1} parent=1 // pred_check
      _
    $region15: #{actor_forward.1} parent=1 // pred_check_branch
      %31 = sbr.rel (0) target = $region17
    $region16: #{actor_forward.1} parent=1 // pred_region
      _
    $region17: #{actor_forward.1} parent=1 // pred_fallthru
      _
    // Predicated region
    $region18: #{actor_forward.1} parent=1 // pred_check
      _
    $region19: #{actor_forward.1} parent=1 // pred_check_branch
      %33 = sbr.rel (0) target = $region21
    $region20: #{actor_forward.1} parent=1 // pred_region
      _
    $region21: #{actor_forward.1} parent=1 // pred_fallthru
      _
    // Predicated region
    $region22: #{actor_forward.1} parent=1 // pred_check
      _
    $region23: #{actor_forward.1} parent=1 // pred_check_branch
      %35 = sbr.rel (0) target = $region25
    $region24: #{actor_forward.1} parent=1 // pred_region
      _
    $region25: #{actor_forward.1} parent=1 // pred_fallthru
      _
    // Predicated region
    $region26: #{actor_forward.1} parent=1 // pred_check
      _
    $region27: #{actor_forward.1} parent=1 // pred_check_branch
      %37 = sbr.rel (0) target = $region29
    $region28: #{actor_forward.1} parent=1 // pred_region
      _
    $region29: #{actor_forward.1} parent=1 // pred_fallthru
      _
    // Predicated region
    $region30: #{actor_forward.1} parent=1 // pred_check
      _
    $region31: #{actor_forward.1} parent=1 // pred_check_branch
      %39 = sbr.rel (0) target = $region33
    $region32: #{actor_forward.1} parent=1 // pred_region
      %41 = dma.done [#allocation3], 256
    $region33: #{actor_forward.1} parent=1 // pred_fallthru
      _
    %v42 = vld [vmem:[%s0] sm:$0xff]
    %v43 = vld [vmem:[#allocation2] sm:$0xff]
    %v44 = vld [vmem:[#allocation2 + $0x8] sm:$0xff]
    %v45 = vld [vmem:[%s2] sm:$0x1]
    %v47 = vperm.slane %v45, 0
    %vm49 = vcmask 130048
    %v51 = vsel %vm49, %v42, 0
    %53 = vmatpush.msra.mxu0 0.0
    %54 = vmatpush.msra.mxu0 0.0
    %55 = vmatpush.msra.mxu0 0.0
    %56 = vmatpush.msra.mxu0 0.0
    %57 = vmatpush.msra.mxu0 0.0
    %58 = vmatpush.msra.mxu0 0.0
    %59 = vmatpush.msra.mxu0 0.0
    %60 = vmatpush.msra.mxu0 0.0
    %61 = vmatpush.msra.mxu0 0.0
    %62 = vmatpush.msra.mxu0 0.0
    %63 = vmatpush.msra.mxu0 0.0
    %64 = vmatpush.msra.mxu0 0.0
    %65 = vmatpush.msra.mxu0 0.0
    %66 = vmatpush.msra.mxu0 0.0
    %67 = vmatpush.msra.mxu0 %v44
    %68 = vmatpush.msra.mxu0 %v43
    %69 = vmatmul.f32.gmra.mxu0 %v51
    %v70 = vpop.f32.mrf.mxu0
    %v71 = vadd.f32 %v47, %v70
    %72 = vdwg.mxu0
    %v73 = vmax.f32 %v71, 0.0
    %v74 = vld [vmem:[%s3] sm:$0xff]
    %v75 = vld [vmem:[%s3 + $0x8] sm:$0xff]
    %v76 = vld [vmem:[%s3 + $0x10] sm:$0xff]
    %v77 = vld [vmem:[%s3 + $0x18] sm:$0xff]
    %v78 = vld [vmem:[%s4] sm:$0x1]
    %v80 = vperm.slane %v78, 0
    %vm82 = vcmask 261120
    %v84 = vsel %vm82, %v73, 0
    %86 = vmatpush.msra.mxu0 0.0
    %87 = vmatpush.msra.mxu0 0.0
    %88 = vmatpush.msra.mxu0 0.0
    %89 = vmatpush.msra.mxu0 0.0
    %90 = vmatpush.msra.mxu0 0.0
    %91 = vmatpush.msra.mxu0 0.0
    %92 = vmatpush.msra.mxu0 0.0
    %93 = vmatpush.msra.mxu0 0.0
    %94 = vmatpush.msra.mxu0 0.0
    %95 = vmatpush.msra.mxu0 0.0
    %96 = vmatpush.msra.mxu0 0.0
    %97 = vmatpush.msra.mxu0 0.0
    %98 = vmatpush.msra.mxu0 %v77
    %99 = vmatpush.msra.mxu0 %v76
    %100 = vmatpush.msra.mxu0 %v75
    %101 = vmatpush.msra.mxu0 %v74
    %102 = vmatmul.f32.gmra.mxu0 %v84
    %v103 = vpop.f32.mrf.mxu0
    %v104 = vadd.f32 %v80, %v103
    %105 = vdwg.mxu0
    %v106 = vmax.f32 %v104, 0.0
    %v107 = vld [vmem:[%s5] sm:$0xff]
    %v108 = vld [vmem:[%s5 + $0x8] sm:$0xff]
    %v109 = vld [vmem:[%s5 + $0x10] sm:$0xff]
    %v110 = vld [vmem:[%s5 + $0x18] sm:$0xff]
    %v111 = vld [vmem:[%s6] sm:$0x1]
    %v113 = vperm.slane %v111, 0
    %v116 = vsel %vm82, %v106, 0
    %118 = vmatpush.msra.mxu0 0.0
    %119 = vmatpush.msra.mxu0 0.0
    %120 = vmatpush.msra.mxu0 0.0
    %121 = vmatpush.msra.mxu0 0.0
    %122 = vmatpush.msra.mxu0 0.0
    %123 = vmatpush.msra.mxu0 0.0
    %124 = vmatpush.msra.mxu0 0.0
    %125 = vmatpush.msra.mxu0 0.0
    %126 = vmatpush.msra.mxu0 0.0
    %127 = vmatpush.msra.mxu0 0.0
    %128 = vmatpush.msra.mxu0 0.0
    %129 = vmatpush.msra.mxu0 0.0
    %130 = vmatpush.msra.mxu0 %v110
    %131 = vmatpush.msra.mxu0 %v109
    %132 = vmatpush.msra.mxu0 %v108
    %133 = vmatpush.msra.mxu0 %v107
    %134 = vmatmul.f32.gmra.mxu0 %v116
    %v135 = vpop.f32.mrf.mxu0
    %v136 = vadd.f32 %v113, %v135
    %137 = vdwg.mxu0
    %v138 = vlaneseq
    %v139 = vand.u32 %v138, 127
    %v140 = vmax.f32 %v136, -20.0
    %v141 = vmin.f32 %v140, 2.0
    %v142 = vmul.f32 %v141, 1.442695
    %v143 = vpow.pop %v142
    %vm144 = vcmp.ge.s32.totalorder %v139, 4
    %v145 = vsel %vm144, %v143, %v136
    %vm146 = vcmask 64512
    %147 = vst.msk [vmem:[%s7] sm:$0xff] %vm146, %v145
    // Predicated region
    $region34: #{actor_forward.1} parent=1 // pred_check
      _
    $region35: #{actor_forward.1} parent=1 // pred_check_branch
      %149 = sbr.rel (0) target = $region37
    $region36: #{actor_forward.1} parent=1 // pred_region
      _
    $region37: #{actor_forward.1} parent=1 // pred_fallthru
      _
    // Predicated region
    $region38: #{actor_forward.1} parent=1 // pred_check
      _
    $region39: #{actor_forward.1} parent=1 // pred_check_branch
      %151 = sbr.rel (0) target = $region41
    $region40: #{actor_forward.1} parent=1 // pred_region
      _
    $region41: #{actor_forward.1} parent=1 // pred_fallthru
      _
    %152 = vsyncpa [#allocation3], 1

</llo_original>
